<compile_context>
chip_gen: v7x
topology: tpu7x:2x2x1
jax: 0.10.0
libtpu: 0.0.40
codegen_flags: <defaults>
</compile_context>

<pallas_src>
import jax
import jax.numpy as jnp
from jax.experimental import pallas as pl
from jax.experimental.pallas import tpu as pltpu

_LANES = 128
_SUBLANES = 8


def linear_kernel(x_ref, w_ref, b_ref, o_ref):
    # Pure VPU elementwise: one multiply-add per vreg.
    # w_ref / b_ref are (1, 1) SMEM-resident scalars.
    o_ref[...] = x_ref[...] * w_ref[0, 0] + b_ref[0, 0]


def my_lr_forward(x, w, b):
    """x: (N, 1) f32, w: (1, 1) f32, b: (1,) f32.

    Returns (N, 1) f32 == x @ w + b  (same semantics as nn.Linear(1, 1)).
    """
    n, in_f = x.shape
    out_f = w.shape[1]
    assert in_f == 1 and out_f == 1, "myLr is a 1->1 linear layer"

    # Lane-dense layout plumbing: pad N up to a whole (8, 128) vreg tile and
    # view the data as a (rows, 128) slab (rows is a multiple of 8).
    tile = _SUBLANES * _LANES
    n_pad = ((n + tile - 1) // tile) * tile
    x_slab = (
        jnp.pad(x.reshape(n).astype(jnp.float32), (0, n_pad - n))
        .reshape(n_pad // _LANES, _LANES)
    )

    w_s = w.reshape(1, 1).astype(jnp.float32)
    b_s = b.reshape(1, 1).astype(jnp.float32)

    out_slab = pl.pallas_call(
        linear_kernel,
        out_shape=jax.ShapeDtypeStruct(x_slab.shape, jnp.float32),
        # No grid: single invocation, whole-array blocks (nothing to pipeline).
        in_specs=[
            pl.BlockSpec(memory_space=pltpu.MemorySpace.VMEM),  # x slab
            pl.BlockSpec(memory_space=pltpu.MemorySpace.SMEM),  # w scalar
            pl.BlockSpec(memory_space=pltpu.MemorySpace.SMEM),  # b scalar
        ],
        out_specs=pl.BlockSpec(memory_space=pltpu.MemorySpace.VMEM),
    )(x_slab, w_s, b_s)

    # Undo the layout plumbing: back to (N, 1), drop the padded rows.
    return out_slab.reshape(n_pad, 1)[:n, :]


if __name__ == "__main__":
    key = jax.random.PRNGKey(0)
    kx, kw, kb = jax.random.split(key, 3)

    # Input: matches the script's `x = torch.rand(500, 1)`.
    x = jax.random.uniform(kx, (500, 1), dtype=jnp.float32)

    # Deterministic parameter init for nn.Linear(1, 1):
    # PyTorch default init is U(-1/sqrt(fan_in), 1/sqrt(fan_in)), fan_in = 1.
    w = jax.random.uniform(kw, (1, 1), dtype=jnp.float32, minval=-1.0, maxval=1.0)
    b = jax.random.uniform(kb, (1,), dtype=jnp.float32, minval=-1.0, maxval=1.0)

    out = my_lr_forward(x, w, b)
    jax.block_until_ready(out)

    # Correctness check against the plain-JAX reference of the same math.
    ref = x @ w + b.reshape(1, 1)
    assert out.shape == (500, 1) and out.dtype == jnp.float32
    assert jnp.allclose(out, ref, atol=1e-5, rtol=1e-5)

    print("KERNEL_OK")
</pallas_src>

<mosaic_0001>
module attributes {stable_mosaic.version = 11 : i64} {
  func.func @linear_kernel(%arg0: memref<8x128xf32, #tpu.memory_space<vmem>>, %arg1: memref<1x1xf32, #tpu.memory_space<smem>>, %arg2: memref<1x1xf32, #tpu.memory_space<smem>>, %arg3: memref<8x128xf32, #tpu.memory_space<vmem>>) attributes {dimension_semantics = [], scalar_prefetch = 0 : i64, scratch_operands = 0 : i64, tpu.core_type = #tpu.core_type<tc>} {
    %c0 = arith.constant 0 : index
    %c0_0 = arith.constant 0 : index
    %0 = vector.load %arg0[%c0, %c0_0] : memref<8x128xf32, #tpu.memory_space<vmem>>, vector<8x128xf32>
    %c0_1 = arith.constant 0 : index
    %c0_2 = arith.constant 0 : index
    %1 = memref.load %arg1[%c0_1, %c0_2] : memref<1x1xf32, #tpu.memory_space<smem>>
    %2 = vector.broadcast %1 : f32 to vector<8x128xf32>
    %3 = arith.mulf %0, %2 : vector<8x128xf32>
    %c0_3 = arith.constant 0 : index
    %c0_4 = arith.constant 0 : index
    %4 = memref.load %arg2[%c0_3, %c0_4] : memref<1x1xf32, #tpu.memory_space<smem>>
    %5 = vector.broadcast %4 : f32 to vector<8x128xf32>
    %6 = arith.addf %3, %5 : vector<8x128xf32>
    %c0_5 = arith.constant 0 : index
    %c0_6 = arith.constant 0 : index
    %7 = vector.load %arg3[%c0_5, %c0_6] : memref<8x128xf32, #tpu.memory_space<vmem>>, vector<8x128xf32>
    tpu.vector_store %arg3[%c0_5, %c0_6], %6 {strides = array<i32>} : memref<8x128xf32, #tpu.memory_space<vmem>>, vector<8x128xf32>,
    return
  }
}

</mosaic_0001>

<llo_original>
// kernel: tpu_custom_call.1
$region0: #{tpu_custom_call.1}
  #allocation0 [shape = 'u32[]', space=smem, size = 0x4, offset = 0x4, fixed_abs, tag = 'smem constant byte address 0x4 - core index']
  #allocation1 [shape = 'u32[144,128]{1,0:T(1,128)}', space=vmem, size = 0x12000, scoped, tag = 'internal scratch']
  #allocation2 [shape = 'f32[1,1]{1,0:T(1,128)S(6)}', space=smem, size = 0x200, scoped, tag = 'scoped memory for tpu_custom_call.1']
  #allocation3 [shape = 'f32[1,1]{1,0:T(1,128)S(6)}', space=smem, size = 0x200, scoped, tag = 'scoped memory for tpu_custom_call.1']
  %s0 = inlined_call_operand.hbm [shape: f32[8,128], index: 0, kind: input, shape index: {}]
  %s1 = inlined_call_operand.<no memory space> [shape: f32[1,1], index: 1, kind: input, shape index: {}]
  %s2 = inlined_call_operand.<no memory space> [shape: f32[1,1], index: 2, kind: input, shape index: {}]
  %s3 = inlined_call_operand.hbm [shape: f32[8,128], index: 3, kind: output, shape index: {}]
  %s4 = sld [smem:[#allocation0]]
  $region26: #{tpu_custom_call.1} parent=0
    _
  %s6 = ssub.s32 1, %s4
  %s7 = scalar_select 0, %s6, %s4
  %8 = sst [smem:[#allocation2]] %s1
  %9 = sst [smem:[#allocation3]] %s2
  $region1: #{tpu_custom_call.1} parent=0
    #allocation4 [shape = 'u8[4096]{0}', space=vmem, size = 0x1000, scoped, tag = 'input window, operand 0, single buffered']
    #allocation5 [shape = 's32[1]{0}', space=sflag, size = 0x4, scoped, tag = 'scoped memory for tpu_custom_call.1']
    #allocation6 [shape = 's32[1]{0}', space=sflag, size = 0x4, scoped, tag = 'scoped memory for tpu_custom_call.1']
    #allocation7 [shape = 'u8[4096]{0}', space=vmem, size = 0x1000, scoped, tag = 'output window, operand 0, single buffered']
    %10 = vsyncpa [#allocation5], 0
    %11 = vsyncpa [#allocation6], 0
    // Predicated region
    $region2: #{tpu_custom_call.1} parent=1 // pred_check
      _
    $region3: #{tpu_custom_call.1} parent=1 // pred_check_branch
      %13 = sbr.rel (0) target = $region5
    $region4: #{tpu_custom_call.1} parent=1 // pred_region
      %s15 = ssub.s32 128, 128
      %16 = vsyncadd [#allocation5], %s15
      %s18 = sshll.u32 [#allocation4], 4
      %s19 = int_to_ptr.vmem [resolvable:$true] %s18
      %21 = dma.hbm_to_vmem [thread:$0]  %s0, 128, %s19, [#allocation5]
    $region5: #{tpu_custom_call.1} parent=1 // pred_fallthru
      _
    // Predicated region
    $region6: #{tpu_custom_call.1} parent=1 // pred_check
      _
    $region7: #{tpu_custom_call.1} parent=1 // pred_check_branch
      %23 = sbr.rel (0) target = $region9
    $region8: #{tpu_custom_call.1} parent=1 // pred_region
      _
    $region9: #{tpu_custom_call.1} parent=1 // pred_fallthru
      _
    // Predicated region
    $region10: #{tpu_custom_call.1} parent=1 // pred_check
      _
    $region11: #{tpu_custom_call.1} parent=1 // pred_check_branch
      %25 = sbr.rel (0) target = $region13
    $region12: #{tpu_custom_call.1} parent=1 // pred_region
      _
    $region13: #{tpu_custom_call.1} parent=1 // pred_fallthru
      _
    // Predicated region
    $region14: #{tpu_custom_call.1} parent=1 // pred_check
      _
    $region15: #{tpu_custom_call.1} parent=1 // pred_check_branch
      %27 = sbr.rel (0) target = $region17
    $region16: #{tpu_custom_call.1} parent=1 // pred_region
      %28 = dma.done [#allocation5], 128
    $region17: #{tpu_custom_call.1} parent=1 // pred_fallthru
      _
    %v29 = vld [vmem:[#allocation4] sm:$0xff]
    %s30 = sld [smem:[#allocation2]]
    %v31 = vstv %s30
    %v32 = vmul.f32 %v29, %v31
    %s33 = sld [smem:[#allocation3]]
    %v34 = vstv %s33
    %v35 = vadd.f32 %v32, %v34
    %36 = vst [vmem:[#allocation7] sm:$0xff] %v35
    // Predicated region
    $region18: #{tpu_custom_call.1} parent=1 // pred_check
      _
    $region19: #{tpu_custom_call.1} parent=1 // pred_check_branch
      %38 = sbr.rel (0) target = $region21
    $region20: #{tpu_custom_call.1} parent=1 // pred_region
      %s40 = ssub.s32 128, 128
      %41 = vsyncadd [#allocation6], %s40
      %s43 = sshll.u32 [#allocation7], 4
      %s44 = int_to_ptr.vmem [resolvable:$true] %s43
      %46 = dma.vmem_to_hbm [thread:$0]  %s44, 128, %s3, [#allocation6]
    $region21: #{tpu_custom_call.1} parent=1 // pred_fallthru
      _
    // Predicated region
    $region22: #{tpu_custom_call.1} parent=1 // pred_check
      _
    $region23: #{tpu_custom_call.1} parent=1 // pred_check_branch
      %48 = sbr.rel (0) target = $region25
    $region24: #{tpu_custom_call.1} parent=1 // pred_region
      %49 = dma.done [#allocation6], 128
    $region25: #{tpu_custom_call.1} parent=1 // pred_fallthru
      _
    %50 = vsyncpa [#allocation5], 1
    %51 = vsyncpa [#allocation6], 1

</llo_original>
